<compile_context>
chip_gen: v7x
topology: tpu7x:2x2x1
jax: 0.10.0
libtpu: 0.0.40
codegen_flags: <defaults>
</compile_context>

<pallas_src>
import functools

import jax
import jax.numpy as jnp
import numpy as np
from jax.experimental import pallas as pl
from jax.experimental.pallas import tpu as pltpu

# VMEM sizing, conservative so the same tile choices run on v5e/v6e (128 MiB)
# and v7x (64 MiB physical, 32 MiB scoped default).
_VMEM_LIMIT_BYTES = 48 * 1024 * 1024        # scoped VMEM we allow Mosaic to use
_VMEM_BUDGET_BYTES = 40 * 1024 * 1024       # target double-buffered working set
_WEIGHT_RESIDENT_BYTES = 8 * 1024 * 1024    # fast path: whole W_T kept in VMEM


def _fuse_cat_kernel_resident(x_ref, wt_ref, b_ref, o_ref):
    """Weight-resident path: full K in one block -> no accumulator / init / finalize."""
    x = jnp.maximum(x_ref[...], 0).astype(wt_ref.dtype)          # relu, match weight dtype
    acc = jnp.dot(x, wt_ref[...], preferred_element_type=jnp.float32)
    o_ref[...] = (acc + b_ref[...].astype(jnp.float32)).astype(o_ref.dtype)


def _fuse_cat_kernel_tiled(x_ref, wt_ref, b_ref, o_ref, acc_ref):
    """K-tiled path for weights too large for VMEM: f32 accumulator over the K axis."""
    k = pl.program_id(2)

    @pl.when(k == 0)
    def _init():
        acc_ref[...] = jnp.zeros_like(acc_ref)

    x = jnp.maximum(x_ref[...], 0).astype(wt_ref.dtype)
    acc_ref[...] += jnp.dot(x, wt_ref[...], preferred_element_type=jnp.float32)

    @pl.when(k == pl.num_programs(2) - 1)
    def _finalize():
        o_ref[...] = (acc_ref[...] + b_ref[...].astype(jnp.float32)).astype(o_ref.dtype)


def _pick_tile(dim, preferred, align):
    """Largest tile <= `preferred` (halving) that divides `dim` and respects `align`;
    otherwise the full extent, which is always a legal block shape."""
    cand = preferred
    while cand >= align:
        if dim % cand == 0:
            return cand
        cand //= 2
    return dim


def prepare_fuse_cat_params(weight, bias, param_dtype=None):
    """One-time PyTorch nn.Linear -> lane-dense layout conversion (outside forward).

      weight: [F_out, F_in] -> W_T: [F_in, F_out]   (output features lane-dense)
      bias:   [F_out]       -> b:   [1, F_out]

    Pass param_dtype=jnp.bfloat16 to halve weight HBM traffic (opt-in: changes
    numerics vs the f32 PyTorch reference; the MXU still accumulates in f32).
    """
    wt = jnp.asarray(weight).T
    b2 = jnp.asarray(bias).reshape(1, -1)
    if param_dtype is not None:
        wt = wt.astype(param_dtype)
        b2 = b2.astype(param_dtype)
    return wt, b2


def fuse_model_cat_forward(x, wt, b2, *, tm=None, tk=None, tn=None,
                           weight_resident_bytes=_WEIGHT_RESIDENT_BYTES):
    """x: [B, F_in], wt: [F_in, F_out] (pre-transposed), b2: [1, F_out]."""
    B, F_in = x.shape
    F_in_w, F_out = wt.shape
    assert F_in == F_in_w, "x and W_T contraction dims must match"

    w_bytes = jnp.dtype(wt.dtype).itemsize
    x_bytes = jnp.dtype(x.dtype).itemsize
    o_bytes = x_bytes                        # output keeps the activation dtype
    m_align = 16 if x_bytes == 2 else 8      # bf16 packs 2 rows/sublane -> 16-aligned M

    # HBM-bound defaults: big K/N tiles (roughly doubled for 2-byte weights).
    if tm is None:
        tm = 512
    if tk is None:
        tk = 2048 if w_bytes <= 2 else 1024
    if tn is None:
        tn = 1024 if w_bytes <= 2 else 512

    def working_set(bm_, bk_, bn_, with_acc):
        ws = 2 * (bm_ * bk_ * x_bytes        # x tile (double-buffered)
                  + bk_ * bn_ * w_bytes      # W_T tile
                  + bn_ * w_bytes            # bias tile
                  + bm_ * bn_ * o_bytes)     # output tile
        if with_acc:
            ws += bm_ * bn_ * 4              # f32 accumulator scratch
        return ws

    make_params = functools.partial(pltpu.CompilerParams,
                                    vmem_limit_bytes=_VMEM_LIMIT_BYTES)

    if F_in * F_out * w_bytes <= weight_resident_bytes:
        # ------- Fast path: full K (and usually all of F_out) resident in VMEM -------
        bk = F_in
        bn = _pick_tile(F_out, tn, 128)
        bm = _pick_tile(B, tm, m_align)

        # v7x has 2 TensorCores: guarantee >= 2 blocks on a parallel axis when the
        # grid would otherwise collapse to a single block (keeps bn a multiple of 128).
        if B <= bm and F_out <= bn and bn % 256 == 0:
            bn //= 2

        # Shrink the batch tile until the double-buffered working set fits.
        while (working_set(bm, bk, bn, False) > _VMEM_BUDGET_BYTES
               and bm % (2 * m_align) == 0):
            bm //= 2

        # M innermost -> the W_T block index (0, j) is constant across consecutive
        # steps, so Pallas DMAs the weight once per N-block (once per call if one block).
        grid = (pl.cdiv(F_out, bn), pl.cdiv(B, bm))
        return pl.pallas_call(
            _fuse_cat_kernel_resident,
            out_shape=jax.ShapeDtypeStruct((B, F_out), x.dtype),
            grid_spec=pltpu.PrefetchScalarGridSpec(
                num_scalar_prefetch=0,
                grid=grid,
                in_specs=[
                    pl.BlockSpec((bm, bk), lambda j, i: (i, 0)),   # x tile
                    pl.BlockSpec((bk, bn), lambda j, i: (0, j)),   # resident W_T tile
                    pl.BlockSpec((1, bn), lambda j, i: (0, j)),    # bias tile
                ],
                out_specs=pl.BlockSpec((bm, bn), lambda j, i: (i, j)),
            ),
            compiler_params=make_params(
                dimension_semantics=("parallel", "parallel")),
        )(x, wt, b2)

    # ------- Tiled path: weight streamed from HBM, K accumulated in f32 scratch -------
    bm = _pick_tile(B, tm, m_align)
    bk = _pick_tile(F_in, tk, 128)
    bn = _pick_tile(F_out, tn, 128)
    while (working_set(bm, bk, bn, True) > _VMEM_BUDGET_BYTES and bk % 256 == 0):
        bk //= 2
    while (working_set(bm, bk, bn, True) > _VMEM_BUDGET_BYTES
           and bm % (2 * m_align) == 0):
        bm //= 2

    # NOTE: with this (i, j, k) order the full weight is re-read ceil(B/bm) times from
    # HBM and x is re-read ceil(F_out/bn) times; keep bm as large as VMEM allows for
    # big batches since weight traffic dominates the mem-bound roofline.
    grid = (pl.cdiv(B, bm), pl.cdiv(F_out, bn), pl.cdiv(F_in, bk))   # K last
    return pl.pallas_call(
        _fuse_cat_kernel_tiled,
        out_shape=jax.ShapeDtypeStruct((B, F_out), x.dtype),
        grid_spec=pltpu.PrefetchScalarGridSpec(
            num_scalar_prefetch=0,
            grid=grid,
            in_specs=[
                pl.BlockSpec((bm, bk), lambda i, j, k: (i, k)),   # x tile
                pl.BlockSpec((bk, bn), lambda i, j, k: (k, j)),   # W_T tile
                pl.BlockSpec((1, bn), lambda i, j, k: (0, j)),    # bias tile
            ],
            out_specs=pl.BlockSpec((bm, bn), lambda i, j, k: (i, j)),
            scratch_shapes=[pltpu.VMEM((bm, bn), jnp.float32)],   # f32 accumulator
        ),
        compiler_params=make_params(
            dimension_semantics=("parallel", "parallel", "arbitrary")),
    )(x, wt, b2)


def _reference(x, weight, bias):
    xn = np.asarray(x, dtype=np.float64)
    wn = np.asarray(weight, dtype=np.float64)
    bn = np.asarray(bias, dtype=np.float64)
    return np.maximum(xn, 0.0) @ wn.T + bn


if __name__ == "__main__":
    root_key = jax.random.PRNGKey(0)

    def run_case(batch, in_features, out_features, dtype, **fwd_kwargs):
        kx, kw, kb = jax.random.split(jax.random.fold_in(root_key, in_features + batch), 3)
        x = jax.random.normal(kx, (batch, in_features), dtype=dtype)
        # Deterministic nn.Linear-style init: U(-1/sqrt(fan_in), 1/sqrt(fan_in))
        bound = 1.0 / np.sqrt(in_features)
        weight = jax.random.uniform(kw, (out_features, in_features),
                                    minval=-bound, maxval=bound, dtype=dtype)
        bias = jax.random.uniform(kb, (out_features,),
                                  minval=-bound, maxval=bound, dtype=dtype)

        wt, b2 = prepare_fuse_cat_params(weight, bias)   # one-time, outside forward
        fwd = jax.jit(functools.partial(fuse_model_cat_forward, **fwd_kwargs))
        y = jax.block_until_ready(fwd(x, wt, b2))

        y_ref = _reference(x, weight, bias)
        np.testing.assert_allclose(np.asarray(y, dtype=np.float32),
                                   y_ref.astype(np.float32),
                                   rtol=2e-3, atol=2e-3)

    # Module config from the spec: input_shapes=[16, 16] -> 32 in-features, 8 out.
    # Degenerate size -> weight-resident fast path with a single full-extent block.
    run_case(batch=2, in_features=32, out_features=8, dtype=jnp.float32)

    # Fast path with the megacore N-split (grid (2, 1)): weight resident, no K axis.
    run_case(batch=16, in_features=1024, out_features=256, dtype=jnp.float32)

    # Force the K-tiled accumulator path (4 K steps) to exercise init/finalize.
    run_case(batch=16, in_features=1024, out_features=256, dtype=jnp.float32,
             tk=256, weight_resident_bytes=0)

    print("KERNEL_OK")
</pallas_src>

<mosaic_0001>
module attributes {stable_mosaic.version = 11 : i64} {
  func.func @_fuse_cat_kernel_resident(%arg0: i32, %arg1: i32, %arg2: memref<2x32xf32, #tpu.memory_space<vmem>>, %arg3: memref<32x8xf32, #tpu.memory_space<vmem>>, %arg4: memref<1x8xf32, #tpu.memory_space<vmem>>, %arg5: memref<2x8xf32, #tpu.memory_space<vmem>>) attributes {dimension_semantics = [#tpu.dimension_semantics<parallel>, #tpu.dimension_semantics<parallel>], iteration_bounds = array<i64: 1, 1>, scalar_prefetch = 0 : i64, scratch_operands = 0 : i64, tpu.core_type = #tpu.core_type<tc>, window_params = [{transform_indices = @transform_0, window_bounds = array<i64: 2, 32>}, {transform_indices = @transform_1, window_bounds = array<i64: 32, 8>}, {transform_indices = @transform_2, window_bounds = array<i64: 1, 8>}, {transform_indices = @transform_3, window_bounds = array<i64: 2, 8>}]} {
    %c0 = arith.constant 0 : index
    %c0_0 = arith.constant 0 : index
    %0 = vector.load %arg2[%c0, %c0_0] : memref<2x32xf32, #tpu.memory_space<vmem>>, vector<2x32xf32>
    %cst = arith.constant 0.000000e+00 : f32
    %1 = vector.broadcast %cst : f32 to vector<2x32xf32>
    %2 = arith.maximumf %0, %1 : vector<2x32xf32>
    %c0_1 = arith.constant 0 : index
    %c0_2 = arith.constant 0 : index
    %3 = vector.load %arg3[%c0_1, %c0_2] : memref<32x8xf32, #tpu.memory_space<vmem>>, vector<32x8xf32>
    %cst_3 = arith.constant dense<0.000000e+00> : vector<2x8xf32>
    %4 = tpu.matmul %2, %3, %cst_3 {dimension_numbers = #tpu.dot_dimension_numbers<[1], [0], [0], [1], [0, 0, 1, 1], [], []>} : vector<2x32xf32>, vector<32x8xf32>, vector<2x8xf32> -> vector<2x8xf32>
    %c0_4 = arith.constant 0 : index
    %c0_5 = arith.constant 0 : index
    %5 = vector.load %arg4[%c0_4, %c0_5] : memref<1x8xf32, #tpu.memory_space<vmem>>, vector<1x8xf32>
    %6 = vector.broadcast %5 : vector<1x8xf32> to vector<2x8xf32>
    %7 = arith.addf %4, %6 : vector<2x8xf32>
    %c0_6 = arith.constant 0 : index
    %c0_7 = arith.constant 0 : index
    %8 = vector.load %arg5[%c0_6, %c0_7] : memref<2x8xf32, #tpu.memory_space<vmem>>, vector<2x8xf32>
    tpu.vector_store %arg5[%c0_6, %c0_7], %7 {strides = array<i32>} : memref<2x8xf32, #tpu.memory_space<vmem>>, vector<2x8xf32>,
    return
  }
  func.func @transform_0(%arg0: i32, %arg1: i32) -> (i32, i32) {
    %c0_i32 = arith.constant 0 : i32
    %c0_i32_0 = arith.constant 0 : i32
    return %arg1, %c0_i32 : i32, i32
  }
  func.func @transform_1(%arg0: i32, %arg1: i32) -> (i32, i32) {
    %c0_i32 = arith.constant 0 : i32
    %c0_i32_0 = arith.constant 0 : i32
    return %c0_i32, %arg0 : i32, i32
  }
  func.func @transform_2(%arg0: i32, %arg1: i32) -> (i32, i32) {
    %c0_i32 = arith.constant 0 : i32
    %c0_i32_0 = arith.constant 0 : i32
    return %c0_i32, %arg0 : i32, i32
  }
  func.func @transform_3(%arg0: i32, %arg1: i32) -> (i32, i32) {
    %c0_i32 = arith.constant 0 : i32
    return %arg1, %arg0 : i32, i32
  }
}

</mosaic_0001>

<llo_original>
// kernel: fuse_model_cat_forward.1
$region0: #{fuse_model_cat_forward.1}
  #allocation0 [shape = 'u32[]', space=smem, size = 0x4, offset = 0x4, fixed_abs, tag = 'smem constant byte address 0x4 - core index']
  #allocation1 [shape = 'u32[144,128]{1,0:T(1,128)}', space=vmem, size = 0x12000, scoped, tag = 'internal scratch']
  %s0 = inlined_call_operand.vmem [shape: f32[2,32], index: 0, kind: input, shape index: {}]
  %s1 = inlined_call_operand.vmem [shape: f32[32,8], index: 1, kind: input, shape index: {}]
  %s2 = inlined_call_operand.vmem [shape: f32[1,8], index: 2, kind: input, shape index: {}]
  %s3 = inlined_call_operand.hbm [shape: f32[2,8], index: 3, kind: output, shape index: {}]
  %s4 = sld [smem:[#allocation0]]
  $region22: #{fuse_model_cat_forward.1} parent=0
    _
  %s6 = ssub.s32 1, %s4
  %s7 = scalar_select 0, %s6, %s4
  $region1: #{fuse_model_cat_forward.1} parent=0
    #allocation2 [shape = 'u8[1024]{0}', space=vmem, size = 0x400, scoped, tag = 'output window, operand 0, single buffered']
    #allocation3 [shape = 's32[1]{0}', space=sflag, size = 0x4, scoped, tag = 'scoped memory for fuse_model_cat_forward.1']
    %8 = vsyncpa [#allocation3], 0
    // Predicated region
    $region2: #{fuse_model_cat_forward.1} parent=1 // pred_check
      _
    $region3: #{fuse_model_cat_forward.1} parent=1 // pred_check_branch
      %10 = sbr.rel (0) target = $region5
    $region4: #{fuse_model_cat_forward.1} parent=1 // pred_region
      _
    $region5: #{fuse_model_cat_forward.1} parent=1 // pred_fallthru
      _
    // Predicated region
    $region6: #{fuse_model_cat_forward.1} parent=1 // pred_check
      _
    $region7: #{fuse_model_cat_forward.1} parent=1 // pred_check_branch
      %12 = sbr.rel (0) target = $region9
    $region8: #{fuse_model_cat_forward.1} parent=1 // pred_region
      _
    $region9: #{fuse_model_cat_forward.1} parent=1 // pred_fallthru
      _
    // Predicated region
    $region10: #{fuse_model_cat_forward.1} parent=1 // pred_check
      _
    $region11: #{fuse_model_cat_forward.1} parent=1 // pred_check_branch
      %14 = sbr.rel (0) target = $region13
    $region12: #{fuse_model_cat_forward.1} parent=1 // pred_region
      _
    $region13: #{fuse_model_cat_forward.1} parent=1 // pred_fallthru
      _
    %v15 = vld [vmem:[%s0] sm:$0x3]
    %v16 = vmax.f32 %v15, 0.0
    %v17 = vld [vmem:[%s1] sm:$0xff]
    %v18 = vld [vmem:[%s1 + $0x8] sm:$0xff]
    %v19 = vld [vmem:[%s1 + $0x10] sm:$0xff]
    %v20 = vld [vmem:[%s1 + $0x18] sm:$0xff]
    %v21 = vld [vmem:[%s2] sm:$0x1]
    %v23 = vlaneseq
    %v24 = vshrl.u32 %v23, 7
    %v25 = vsub.s32 0, %v24
    %v26 = vrot.slane %v21, %v25
    %vm28 = vcmask 261120
    %v30 = vsel %vm28, %v16, 0
    %32 = vmatprep.subr.mxu0 0.0
    %33 = vmatpush1.msra.mxu0 %v17
    %34 = vmatprep.subr.mxu0 0.0
    %35 = vmatpush1.msra.mxu0 %v18
    %36 = vmatprep.subr.mxu0 0.0
    %37 = vmatpush1.msra.mxu0 %v19
    %38 = vmatprep.subr.mxu0 0.0
    %39 = vmatpush1.msra.mxu0 %v20
    %40 = vmatprep.subr.mxu0 0.0
    %41 = vmatpush1.msra.mxu0 0.0
    %42 = vmatprep.subr.mxu0 0.0
    %43 = vmatpush1.msra.mxu0 0.0
    %44 = vmatprep.subr.mxu0 0.0
    %45 = vmatpush1.msra.mxu0 0.0
    %46 = vmatprep.subr.mxu0 0.0
    %47 = vmatpush1.msra.mxu0 0.0
    %48 = vmatprep.subr.mxu0 0.0
    %49 = vmatpush1.msra.mxu0 0.0
    %50 = vmatprep.subr.mxu0 0.0
    %51 = vmatpush1.msra.mxu0 0.0
    %52 = vmatprep.subr.mxu0 0.0
    %53 = vmatpush1.msra.mxu0 0.0
    %54 = vmatprep.subr.mxu0 0.0
    %55 = vmatpush1.msra.mxu0 0.0
    %56 = vmatprep.subr.mxu0 0.0
    %57 = vmatpush1.msra.mxu0 0.0
    %58 = vmatprep.subr.mxu0 0.0
    %59 = vmatpush1.msra.mxu0 0.0
    %60 = vmatprep.subr.mxu0 0.0
    %61 = vmatpush1.msra.mxu0 0.0
    %62 = vmatprep.subr.mxu0 0.0
    %63 = vmatpush1.msra.mxu0 0.0
    %64 = vmatprep.subr.mxu0 0.0
    %65 = vmatpush1.msra.mxu0 0.0
    %66 = vmatprep.subr.mxu0 0.0
    %67 = vmatpush1.msra.mxu0 0.0
    %68 = vmatprep.subr.mxu0 0.0
    %69 = vmatpush1.msra.mxu0 0.0
    %70 = vmatprep.subr.mxu0 0.0
    %71 = vmatpush1.msra.mxu0 0.0
    %72 = vmatprep.subr.mxu0 0.0
    %73 = vmatpush1.msra.mxu0 0.0
    %74 = vmatprep.subr.mxu0 0.0
    %75 = vmatpush1.msra.mxu0 0.0
    %76 = vmatprep.subr.mxu0 0.0
    %77 = vmatpush1.msra.mxu0 0.0
    %78 = vmatprep.subr.mxu0 0.0
    %79 = vmatpush1.msra.mxu0 0.0
    %80 = vmatprep.subr.mxu0 0.0
    %81 = vmatpush1.msra.mxu0 0.0
    %82 = vmatprep.subr.mxu0 0.0
    %83 = vmatpush1.msra.mxu0 0.0
    %84 = vmatprep.subr.mxu0 0.0
    %85 = vmatpush1.msra.mxu0 0.0
    %86 = vmatprep.subr.mxu0 0.0
    %87 = vmatpush1.msra.mxu0 0.0
    %88 = vmatprep.subr.mxu0 0.0
    %89 = vmatpush1.msra.mxu0 0.0
    %90 = vmatprep.subr.mxu0 0.0
    %91 = vmatpush1.msra.mxu0 0.0
    %92 = vmatprep.subr.mxu0 0.0
    %93 = vmatpush1.msra.mxu0 0.0
    %94 = vmatprep.subr.mxu0 0.0
    %95 = vmatpush1.msra.mxu0 0.0
    %96 = vmatprep.mubr.f32.mxu0 0.0
    %97 = vmatmul.mubr.f32.gmra.mrb[0].mxu0 %v30
    %v98 = vpop.f32.mrb[0].mxu0
    %v99 = vadd.f32 %v26, %v98
    %v100 = vpop.f32.mrb[0].mxu0
    %101 = vdwg.mxu0
    %vm102 = vcmask 58368
    %103 = vst.msk [vmem:[#allocation2] sm:$0x3] %vm102, %v99
    // Predicated region
    $region14: #{fuse_model_cat_forward.1} parent=1 // pred_check
      _
    $region15: #{fuse_model_cat_forward.1} parent=1 // pred_check_branch
      %105 = sbr.rel (0) target = $region17
    $region16: #{fuse_model_cat_forward.1} parent=1 // pred_region
      %s107 = ssub.s32 32, 32
      %108 = vsyncadd [#allocation3], %s107
      %s110 = sshll.u32 [#allocation2], 4
      %s111 = int_to_ptr.vmem [resolvable:$true] %s110
      %113 = dma.vmem_to_hbm [thread:$0]  %s111, 32, %s3, [#allocation3]
    $region17: #{fuse_model_cat_forward.1} parent=1 // pred_fallthru
      _
    // Predicated region
    $region18: #{fuse_model_cat_forward.1} parent=1 // pred_check
      _
    $region19: #{fuse_model_cat_forward.1} parent=1 // pred_check_branch
      %115 = sbr.rel (0) target = $region21
    $region20: #{fuse_model_cat_forward.1} parent=1 // pred_region
      %116 = dma.done [#allocation3], 32
    $region21: #{fuse_model_cat_forward.1} parent=1 // pred_fallthru
      _
    %117 = vsyncpa [#allocation3], 1

</llo_original>
